<compile_context>
chip_gen: v7x
topology: tpu7x:2x2x1
jax: 0.10.0
libtpu: 0.0.40
codegen_flags: <defaults>
</compile_context>

<pallas_src>
import jax
import jax.numpy as jnp
from jax.experimental import pallas as pl
from jax.experimental.pallas import tpu as pltpu

LANE = 128            # TPU lane width (last dim of every block)
_DEF_TILE_ROWS = 256  # sublane rows per spatial tile (multiple of 32 -> u8-tiling aligned)


def _adv_preprocess_kernel(x_ref, delta_ref, scale_ref, bias_ref, o_ref):
    """Fused elementwise hot path on one (tile_rows, 128) per-channel slab.

    x_ref     : (tile_rows, 128) uint8    image tile (one image, one channel)
    delta_ref : (tile_rows, 128) float32  adversarial perturbation tile (shared over batch)
    scale_ref : (C,) float32 in SMEM      per-channel 1/(255*std)
    bias_ref  : (C,) float32 in SMEM      per-channel -mean/std
    o_ref     : (tile_rows, 128) float32
    """
    c = pl.program_id(0)                              # which channel this grid step handles
    x = x_ref[...].astype(jnp.float32)                # u8 -> f32 in-kernel (free under the DMA)
    adv = jnp.clip(x + delta_ref[...], 0.0, 255.0)    # image_attack: additive + pixel clamp
    # image_processor rescale(1/255) + normalize, folded into a per-channel scalar affine
    o_ref[...] = adv * scale_ref[c] + bias_ref[c]


def adv_image_processor(images_u8, delta, mean, std, *, tile_rows=_DEF_TILE_ROWS):
    """JAX/Pallas equivalent of AdvImageProcessor.forward.

    images_u8 : (N, C, H, W) uint8
    delta     : (C, H, W)    float32  adversarial perturbation
    mean, std : (C,)         float32  normalization constants
    returns   : (N, C, H, W) float32  preprocessed adversarial images
    """
    N, C, H, W = images_u8.shape
    HW = H * W
    R = pl.cdiv(HW, LANE)                 # 128-lane rows per channel

    # Spatial tiling: whole channel if it is small, else tile_rows rows per block.
    if R <= tile_rows:
        tr = R                            # full spatial extent -> always a legal block
    else:
        assert tile_rows % 32 == 0, "tile_rows must be a multiple of 32 (uint8 tiling)"
        tr = tile_rows
    S = pl.cdiv(R, tr)                    # spatial tiles per channel
    R_pad = S * tr
    HW_pad = R_pad * LANE

    # Layout plumbing only (no compute hoisted out of the kernel): flatten spatial to a
    # lane-dense (rows, 128) slab and pad up to the tile grid if needed.
    x = images_u8.reshape(N, C, HW)
    d = delta.astype(jnp.float32).reshape(C, HW)
    if HW_pad != HW:
        x = jnp.pad(x, ((0, 0), (0, 0), (0, HW_pad - HW)))
        d = jnp.pad(d, ((0, 0), (0, HW_pad - HW)))
    x = x.reshape(N, C, R_pad, LANE)
    d = d.reshape(C, R_pad, LANE)

    # Per-channel affine constants (SMEM scalars): fold 1/255 and normalize.
    scale = (1.0 / (255.0 * std)).astype(jnp.float32)   # (C,)
    bias = (-mean / std).astype(jnp.float32)            # (C,)

    out = pl.pallas_call(
        _adv_preprocess_kernel,
        out_shape=jax.ShapeDtypeStruct((N, C, R_pad, LANE), jnp.float32),
        # Batch innermost: delta's block index (c, s) is constant across consecutive
        # steps, so the shared perturbation is not re-DMA'd for every image.
        grid=(C, S, N),
        in_specs=[
            pl.BlockSpec((None, None, tr, LANE), lambda c, s, n: (n, c, s, 0)),  # u8 image tile
            pl.BlockSpec((None, tr, LANE), lambda c, s, n: (c, s, 0)),           # shared delta
            pl.BlockSpec(memory_space=pltpu.MemorySpace.SMEM),                   # scale (C,)
            pl.BlockSpec(memory_space=pltpu.MemorySpace.SMEM),                   # bias  (C,)
        ],
        out_specs=pl.BlockSpec((None, None, tr, LANE), lambda c, s, n: (n, c, s, 0)),
        compiler_params=pltpu.CompilerParams(
            dimension_semantics=("parallel", "parallel", "parallel"),
        ),
    )(x, d, scale, bias)

    out = out.reshape(N, C, HW_pad)
    if HW_pad != HW:
        out = out[:, :, :HW]
    return out.reshape(N, C, H, W)

    # TODO(synk): the wrapped HF `image_processor` may also resize/crop (PIL-side,
    # data-dependent interpolation); only the rescale+normalize tensor hot path is
    # implemented here.


def _reference(images_u8, delta, mean, std):
    x = images_u8.astype(jnp.float32)
    adv = jnp.clip(x + delta[None], 0.0, 255.0)
    return (adv / 255.0 - mean.reshape(1, -1, 1, 1)) / std.reshape(1, -1, 1, 1)


if __name__ == "__main__":
    key = jax.random.PRNGKey(0)
    k_img, k_delta, k_img2, k_delta2 = jax.random.split(key, 4)

    # Deterministic CLIP-style normalization constants.
    mean = jnp.array([0.48145466, 0.4578275, 0.40821073], dtype=jnp.float32)
    std = jnp.array([0.26862954, 0.26130258, 0.27577711], dtype=jnp.float32)

    # Case 1: small batch, single spatial tile (H*W = 1024 = 8 rows x 128 lanes).
    N, C, H, W = 2, 3, 32, 32
    images = jax.random.randint(k_img, (N, C, H, W), 0, 256, dtype=jnp.int32).astype(jnp.uint8)
    delta = 8.0 * jax.random.uniform(k_delta, (C, H, W), jnp.float32, -1.0, 1.0)
    out = jax.block_until_ready(adv_image_processor(images, delta, mean, std))
    ref = _reference(images, delta, mean, std)
    assert out.shape == (N, C, H, W) and out.dtype == jnp.float32
    assert jnp.allclose(out, ref, atol=1e-5, rtol=1e-5), "mismatch vs reference (case 1)"

    # Case 2: exercise the spatial-tile grid axis + padding path
    # (H*W = 9216 -> 72 rows -> padded to 96 rows = 3 tiles of 32).
    N2, C2, H2, W2 = 2, 3, 96, 96
    images2 = jax.random.randint(k_img2, (N2, C2, H2, W2), 0, 256, dtype=jnp.int32).astype(jnp.uint8)
    delta2 = 8.0 * jax.random.uniform(k_delta2, (C2, H2, W2), jnp.float32, -1.0, 1.0)
    out2 = jax.block_until_ready(adv_image_processor(images2, delta2, mean, std, tile_rows=32))
    ref2 = _reference(images2, delta2, mean, std)
    assert out2.shape == (N2, C2, H2, W2) and out2.dtype == jnp.float32
    assert jnp.allclose(out2, ref2, atol=1e-5, rtol=1e-5), "mismatch vs reference (case 2)"

    print("KERNEL_OK")
</pallas_src>

<mosaic_0001>
module attributes {stable_mosaic.version = 11 : i64} {
  func.func @_adv_preprocess_kernel(%arg0: i32, %arg1: i32, %arg2: i32, %arg3: memref<1x1x8x128xi8, #tpu.memory_space<vmem>>, %arg4: memref<1x8x128xf32, #tpu.memory_space<vmem>>, %arg5: memref<3xf32, #tpu.memory_space<smem>>, %arg6: memref<3xf32, #tpu.memory_space<smem>>, %arg7: memref<1x1x8x128xf32, #tpu.memory_space<vmem>>) attributes {dimension_semantics = [#tpu.dimension_semantics<parallel>, #tpu.dimension_semantics<parallel>, #tpu.dimension_semantics<parallel>], iteration_bounds = array<i64: 3, 1, 2>, scalar_prefetch = 0 : i64, scratch_operands = 0 : i64, tpu.core_type = #tpu.core_type<tc>, window_params = [{transform_indices = @transform_0, window_bounds = array<i64: 1, 1, 8, 128>}, {transform_indices = @transform_1, window_bounds = array<i64: 1, 8, 128>}, {transform_indices = @transform_2, window_bounds = array<i64: 3>}, {transform_indices = @transform_3, window_bounds = array<i64: 3>}, {transform_indices = @transform_4, window_bounds = array<i64: 1, 1, 8, 128>}]} {
    %c0 = arith.constant 0 : index
    %c0_0 = arith.constant 0 : index
    %c0_1 = arith.constant 0 : index
    %c0_2 = arith.constant 0 : index
    %0 = vector.load %arg3[%c0, %c0_0, %c0_1, %c0_2] : memref<1x1x8x128xi8, #tpu.memory_space<vmem>>, vector<1x1x8x128xi8>
    %1 = vector.shape_cast %0 : vector<1x1x8x128xi8> to vector<8x128xi8>
    %2 = arith.uitofp %1 : vector<8x128xi8> to vector<8x128xf32>
    %c0_3 = arith.constant 0 : index
    %c0_4 = arith.constant 0 : index
    %c0_5 = arith.constant 0 : index
    %3 = vector.load %arg4[%c0_3, %c0_4, %c0_5] : memref<1x8x128xf32, #tpu.memory_space<vmem>>, vector<1x8x128xf32>
    %4 = vector.shape_cast %3 : vector<1x8x128xf32> to vector<8x128xf32>
    %5 = arith.addf %2, %4 : vector<8x128xf32>
    %cst = arith.constant 0.000000e+00 : f32
    %cst_6 = arith.constant 2.550000e+02 : f32
    %6 = vector.broadcast %cst : f32 to vector<8x128xf32>
    %7 = arith.maximumf %6, %5 : vector<8x128xf32>
    %8 = vector.broadcast %cst_6 : f32 to vector<8x128xf32>
    %9 = arith.minimumf %8, %7 : vector<8x128xf32>
    %10 = arith.index_cast %arg0 : i32 to index
    %11 = memref.load %arg5[%10] : memref<3xf32, #tpu.memory_space<smem>>
    %12 = vector.broadcast %11 : f32 to vector<8x128xf32>
    %13 = arith.mulf %9, %12 : vector<8x128xf32>
    %14 = arith.index_cast %arg0 : i32 to index
    %15 = memref.load %arg6[%14] : memref<3xf32, #tpu.memory_space<smem>>
    %16 = vector.broadcast %15 : f32 to vector<8x128xf32>
    %17 = arith.addf %13, %16 : vector<8x128xf32>
    %c0_7 = arith.constant 0 : index
    %c0_8 = arith.constant 0 : index
    %c0_9 = arith.constant 0 : index
    %c0_10 = arith.constant 0 : index
    %18 = vector.load %arg7[%c0_7, %c0_8, %c0_9, %c0_10] : memref<1x1x8x128xf32, #tpu.memory_space<vmem>>, vector<1x1x8x128xf32>
    %19 = vector.shape_cast %18 : vector<1x1x8x128xf32> to vector<8x128xf32>
    %20 = vector.shape_cast %17 : vector<8x128xf32> to vector<1x1x8x128xf32>
    tpu.vector_store %arg7[%c0_7, %c0_8, %c0_9, %c0_10], %20 {strides = array<i32>} : memref<1x1x8x128xf32, #tpu.memory_space<vmem>>, vector<1x1x8x128xf32>,
    return
  }
  func.func @transform_0(%arg0: i32, %arg1: i32, %arg2: i32) -> (i32, i32, i32, i32) {
    %c0_i32 = arith.constant 0 : i32
    %c0_i32_0 = arith.constant 0 : i32
    return %arg2, %arg0, %arg1, %c0_i32 : i32, i32, i32, i32
  }
  func.func @transform_1(%arg0: i32, %arg1: i32, %arg2: i32) -> (i32, i32, i32) {
    %c0_i32 = arith.constant 0 : i32
    %c0_i32_0 = arith.constant 0 : i32
    return %arg0, %arg1, %c0_i32 : i32, i32, i32
  }
  func.func @transform_2(%arg0: i32, %arg1: i32, %arg2: i32) -> i32 {
    %c0_i32 = arith.constant 0 : i32
    %c0_i32_0 = arith.constant 0 : i32
    return %c0_i32 : i32
  }
  func.func @transform_3(%arg0: i32, %arg1: i32, %arg2: i32) -> i32 {
    %c0_i32 = arith.constant 0 : i32
    %c0_i32_0 = arith.constant 0 : i32
    return %c0_i32 : i32
  }
  func.func @transform_4(%arg0: i32, %arg1: i32, %arg2: i32) -> (i32, i32, i32, i32) {
    %c0_i32 = arith.constant 0 : i32
    %c0_i32_0 = arith.constant 0 : i32
    return %arg2, %arg0, %arg1, %c0_i32 : i32, i32, i32, i32
  }
}

</mosaic_0001>

<llo_original>
// kernel: tpu_custom_call.1
$region0: #{tpu_custom_call.1}
  #allocation0 [shape = 'u32[]', space=smem, size = 0x4, offset = 0x4, fixed_abs, tag = 'smem constant byte address 0x4 - core index']
  #allocation1 [shape = 'u32[144,128]{1,0:T(1,128)}', space=vmem, size = 0x12000, scoped, tag = 'internal scratch']
  %s0 = inlined_call_operand.hbm [shape: u8[2,3,8,128], index: 0, kind: input, shape index: {}]
  %s1 = inlined_call_operand.hbm [shape: f32[3,8,128], index: 1, kind: input, shape index: {}]
  %s2 = inlined_call_operand.vmem [shape: f32[3], index: 2, kind: input, shape index: {}]
  %s3 = inlined_call_operand.vmem [shape: f32[3], index: 3, kind: input, shape index: {}]
  %s4 = inlined_call_operand.hbm [shape: f32[2,3,8,128], index: 4, kind: output, shape index: {}]
  %s5 = sld [smem:[#allocation0]]
  $region65: #{tpu_custom_call.1} parent=0
    _
  %s7 = ssub.s32 1, %s5
  %s8 = scalar_select 0, %s7, %s5
  $region1: #{tpu_custom_call.1} parent=0
    #allocation2 [shape = 'u8[2048]{0}', space=vmem, size = 0x800, scoped, tag = 'input window, operand 0']
    #allocation3 [shape = 's32[2]{0}', space=sflag, size = 0x8, scoped, tag = 'scoped memory for tpu_custom_call.1']
    #allocation4 [shape = 's32[2]{0}', space=sflag, size = 0x8, scoped, tag = 'scoped memory for tpu_custom_call.1']
    #allocation5 [shape = 's32[2]{0}', space=sflag, size = 0x8, scoped, tag = 'scoped memory for tpu_custom_call.1']
    #allocation6 [shape = 'u8[8192]{0}', space=vmem, size = 0x2000, scoped, tag = 'input window, operand 1']
    #allocation7 [shape = 's32[2]{0}', space=sflag, size = 0x8, scoped, tag = 'scoped memory for tpu_custom_call.1']
    #allocation8 [shape = 'u8[512]{0}', space=smem, size = 0x200, scoped, tag = 'input window, operand 2, single buffered']
    #allocation9 [shape = 'u8[512]{0}', space=smem, size = 0x200, scoped, tag = 'input window, operand 3, single buffered']
    #allocation10 [shape = 's32[1]{0}', space=sflag, size = 0x4, scoped, tag = 'scoped memory for tpu_custom_call.1']
    #allocation11 [shape = 'u8[8192]{0}', space=vmem, size = 0x2000, scoped, tag = 'output window, operand 0']
    %9 = vsyncpa [#allocation3], 0
    %s10 = scalar_lea.sflag [#allocation3], 1
    %11 = vsyncpa %s10, 0
    %12 = vsyncpa [#allocation7], 0
    %s13 = scalar_lea.sflag [#allocation7], 1
    %14 = vsyncpa %s13, 0
    %15 = vsyncpa [#allocation5], 0
    %16 = vsyncpa [#allocation10], 0
    %17 = vsyncpa [#allocation4], 0
    %s18 = scalar_lea.sflag [#allocation4], 1
    %19 = vsyncpa %s18, 0
    loop: start=0, step=1, limit=8
    $region2: #{tpu_custom_call.1} parent=1 // loop_pre_header
      _
    $region3: #{tpu_custom_call.1} parent=1 // loop_header
      %s21 = sphi 0, %s25
      %p22 = scmp.ge.s32.totalorder %s21, 8
      %s28 = sphi 0, %s47
      %s29 = sphi 0, %s43
      %s30 = sphi 0, %s39
      %s31 = sphi 0, %s28
      %s32 = sphi 0, %s29
      %s33 = sphi 0, %s30
      %s34 = sphi 0, %s31
      %s35 = sphi 0, %s32
      %s36 = sphi 0, %s33
      %s54 = sphi 0, %s56
      %s57 = sphi 0, %s54
      %s58 = sphi 0, %s57
      %s74 = sphi 0, %s58
      %s82 = sphi 0, %s84
      %s85 = sphi 0, %s82
      %s86 = sphi 0, %s85
      %s102 = sphi 0, %s86
      %s106 = sphi 0, %s106
      %s108 = sphi 0, %s106
      %s109 = sphi 0, %s108
      %s123 = sphi 0, %s109
      %s127 = sphi 0, %s127
      %s129 = sphi 0, %s127
      %s130 = sphi 0, %s129
      %s144 = sphi 0, %s130
      %s154 = sphi 0, %s156
      %s157 = sphi 0, %s154
      %s158 = sphi 0, %s157
      %s174 = sphi 0, %s158
    $region4: #{tpu_custom_call.1} parent=1 // loop_header_branch
      %24 = sbr.rel (%p22) target = $region8
    $region5: #{tpu_custom_call.1} parent=1 // loop_body
      %s26 = ssub.s32 %s21, 1
      %s27 = ssub.s32 %s21, 2
      %s37 = sadd.s32 1, %s30
      %p38 = scmp.ge.s32.totalorder %s37, 2
      %s39 = scalar_select %p38, 0, %s37
      %s40 = sadd.s32 1, %s29
      %s41 = scalar_select %p38, %s40, %s29
      %p42 = scmp.ge.s32.totalorder %s41, 1
      %s43 = scalar_select %p42, 0, %s41
      %s44 = sadd.s32 1, %s28
      %s45 = scalar_select %p42, %s44, %s28
      %p46 = scmp.ge.s32.totalorder %s45, 3
      %s47 = scalar_select %p46, 0, %s45
      %s48 = ssub.s32 %s30, %s39
      %s49 = ssub.s32 %s28, %s47
      %s50 = sor.u32 %s48, %s49
      %s51 = ssub.s32 %s29, %s43
      %s52 = sor.u32 %s50, %s51
      %p53 = scmp.eq.s32.totalorder %s52, 0
      %s55 = sadd.s32 %s54, 1
      %s56 = scalar_select %p53, %s54, %s55
      %p59 = pneg %p53
      %p60 = scmp.eq.s32.totalorder %s21, 5
      %p61 = por %p59, %p60
      %p62 = scmp.ne.s32.totalorder %s54, %s57
      %p63 = scmp.eq.s32.totalorder %s21, 0
      %p64 = por %p62, %p63
      %p65 = scmp.ne.s32.totalorder %s54, %s57
      %p66 = scmp.eq.s32.totalorder %s26, 5
      %p67 = por %p65, %p66
      %p68 = scmp.ne.s32.totalorder %s57, %s58
      %p69 = scmp.eq.s32.totalorder %s26, 0
      %p70 = por %p68, %p69
      %p71 = scmp.ne.s32.totalorder %s57, %s58
      %p72 = scmp.eq.s32.totalorder %s27, 5
      %p73 = por %p71, %p72
      %p75 = scmp.ne.s32.totalorder %s58, %s74
      %p76 = scmp.eq.s32.totalorder %s27, 0
      %p77 = por %p75, %p76
      %s78 = ssub.s32 %s28, %s47
      %s79 = ssub.s32 %s29, %s43
      %s80 = sor.u32 %s78, %s79
      %p81 = scmp.eq.s32.totalorder %s80, 0
      %s83 = sadd.s32 %s82, 1
      %s84 = scalar_select %p81, %s82, %s83
      %p87 = pneg %p81
      %p88 = scmp.eq.s32.totalorder %s21, 5
      %p89 = por %p87, %p88
      %p90 = scmp.ne.s32.totalorder %s82, %s85
      %p91 = scmp.eq.s32.totalorder %s21, 0
      %p92 = por %p90, %p91
      %p93 = scmp.ne.s32.totalorder %s82, %s85
      %p94 = scmp.eq.s32.totalorder %s26, 5
      %p95 = por %p93, %p94
      %p96 = scmp.ne.s32.totalorder %s85, %s86
      %p97 = scmp.eq.s32.totalorder %s26, 0
      %p98 = por %p96, %p97
      %p99 = scmp.ne.s32.totalorder %s85, %s86
      %p100 = scmp.eq.s32.totalorder %s27, 5
      %p101 = por %p99, %p100
      %p103 = scmp.ne.s32.totalorder %s86, %s102
      %p104 = scmp.eq.s32.totalorder %s27, 0
      %p105 = por %p103, %p104
      %s107 = sadd.s32 %s106, 1
      %p110 = scmp.eq.s32.totalorder %s21, 5
      %p111 = scmp.ne.s32.totalorder %s106, %s108
      %p112 = scmp.eq.s32.totalorder %s21, 0
      %p113 = por %p111, %p112
      %p114 = scmp.ne.s32.totalorder %s106, %s108
      %p115 = scmp.eq.s32.totalorder %s26, 5
      %p116 = por %p114, %p115
      %p117 = scmp.ne.s32.totalorder %s108, %s109
      %p118 = scmp.eq.s32.totalorder %s26, 0
      %p119 = por %p117, %p118
      %p120 = scmp.ne.s32.totalorder %s108, %s109
      %p121 = scmp.eq.s32.totalorder %s27, 5
      %p122 = por %p120, %p121
      %p124 = scmp.ne.s32.totalorder %s109, %s123
      %p125 = scmp.eq.s32.totalorder %s27, 0
      %p126 = por %p124, %p125
      %s128 = sadd.s32 %s127, 1
      %p131 = scmp.eq.s32.totalorder %s21, 5
      %p132 = scmp.ne.s32.totalorder %s127, %s129
      %p133 = scmp.eq.s32.totalorder %s21, 0
      %p134 = por %p132, %p133
      %p135 = scmp.ne.s32.totalorder %s127, %s129
      %p136 = scmp.eq.s32.totalorder %s26, 5
      %p137 = por %p135, %p136
      %p138 = scmp.ne.s32.totalorder %s129, %s130
      %p139 = scmp.eq.s32.totalorder %s26, 0
      %p140 = por %p138, %p139
      %p141 = scmp.ne.s32.totalorder %s129, %s130
      %p142 = scmp.eq.s32.totalorder %s27, 5
      %p143 = por %p141, %p142
      %p145 = scmp.ne.s32.totalorder %s130, %s144
      %p146 = scmp.eq.s32.totalorder %s27, 0
      %p147 = por %p145, %p146
      %s148 = ssub.s32 %s30, %s39
      %s149 = ssub.s32 %s28, %s47
      %s150 = sor.u32 %s148, %s149
      %s151 = ssub.s32 %s29, %s43
      %s152 = sor.u32 %s150, %s151
      %p153 = scmp.eq.s32.totalorder %s152, 0
      %s155 = sadd.s32 %s154, 1
      %s156 = scalar_select %p153, %s154, %s155
      %p159 = pneg %p153
      %p160 = scmp.eq.s32.totalorder %s21, 5
      %p161 = por %p159, %p160
      %p162 = scmp.ne.s32.totalorder %s154, %s157
      %p163 = scmp.eq.s32.totalorder %s21, 0
      %p164 = por %p162, %p163
      %p165 = scmp.ne.s32.totalorder %s154, %s157
      %p166 = scmp.eq.s32.totalorder %s26, 5
      %p167 = por %p165, %p166
      %p168 = scmp.ne.s32.totalorder %s157, %s158
      %p169 = scmp.eq.s32.totalorder %s26, 0
      %p170 = por %p168, %p169
      %p171 = scmp.ne.s32.totalorder %s157, %s158
      %p172 = scmp.eq.s32.totalorder %s27, 5
      %p173 = por %p171, %p172
      %p175 = scmp.ne.s32.totalorder %s158, %s174
      %p176 = scmp.eq.s32.totalorder %s27, 0
      %p177 = por %p175, %p176
      %p178 = scmp.le.s32.totalorder 1, %s21
      %p179 = scmp.lt.s32.totalorder %s21, 7
      %p180 = pnand %p178, %p179
      %p181 = pneg %p180
      // Predicated region
      $region9: #{tpu_custom_call.1} parent=5 // pred_check
        _
      $region10: #{tpu_custom_call.1} parent=5 // pred_check_branch
        %183 = sbr.rel (%p180) target = $region12
      $region11: #{tpu_custom_call.1} parent=5 // pred_region
        %s184 = ssub.s32 %s21, 1
        // Predicated region
        $region13: #{tpu_custom_call.1} parent=11 // pred_check
          %p185 = pneg %p119
        $region14: #{tpu_custom_call.1} parent=11 // pred_check_branch
          %187 = sbr.rel (%p185) target = $region16
        $region15: #{tpu_custom_call.1} parent=11 // pred_region
          %s189 = ssub.s32 16, 16
          %190 = vsyncadd [#allocation5], %s189
          %s192 = sshll.u32 %s2, 4
          %s193 = int_to_ptr.vmem [resolvable:$true] %s192
          %195 = dma.vmem_to_smem %s193, 16, [#allocation8], [#allocation5]
        $region16: #{tpu_custom_call.1} parent=11 // pred_fallthru
          _
        // Predicated region
        $region17: #{tpu_custom_call.1} parent=11 // pred_check
          %p196 = pneg %p140
        $region18: #{tpu_custom_call.1} parent=11 // pred_check_branch
          %198 = sbr.rel (%p196) target = $region20
        $region19: #{tpu_custom_call.1} parent=11 // pred_region
          %s200 = ssub.s32 16, 16
          %201 = vsyncadd [#allocation10], %s200
          %s203 = sshll.u32 %s3, 4
          %s204 = int_to_ptr.vmem [resolvable:$true] %s203
          %206 = dma.vmem_to_smem %s204, 16, [#allocation9], [#allocation10]
        $region20: #{tpu_custom_call.1} parent=11 // pred_fallthru
          _
      $region12: #{tpu_custom_call.1} parent=5 // pred_fallthru
        _
      %p207 = scmp.lt.s32.totalorder %s21, 6
      // Predicated region
      $region21: #{tpu_custom_call.1} parent=5 // pred_check
        %p208 = pneg %p207
      $region22: #{tpu_custom_call.1} parent=5 // pred_check_branch
        %210 = sbr.rel (%p208) target = $region24
      $region23: #{tpu_custom_call.1} parent=5 // pred_region
        // Predicated region
        $region25: #{tpu_custom_call.1} parent=23 // pred_check
          %p211 = pneg %p64
        $region26: #{tpu_custom_call.1} parent=23 // pred_check_branch
          %213 = sbr.rel (%p211) target = $region28
        $region27: #{tpu_custom_call.1} parent=23 // pred_region
          %s214 = sand.u32 %s54, 1
          %s215 = scalar_lea.sflag [#allocation3], %s214
          %s216 = sand.u32 %s54, 1
          %s217 = smul.addr %s216, 2
          %s218 = scalar_lea.vmem [#allocation2], %s217
          %s220 = ssub.s32 32, 32
          %221 = vsyncadd %s215, %s220
          %s222 = sadd.s32 %s29, %s28
          %s223 = smul.addr %s30, 3
          %s224 = sadd.s32 %s222, %s223
          %s225 = smul.addr %s224, 32
          %s226 = scalar_lea.hbm %s0, %s225
          %s228 = sshll.u32 %s218, 4
          %s229 = int_to_ptr.vmem [resolvable:$true] %s228
          %231 = dma.hbm_to_vmem [thread:$0]  %s226, 32, %s229, %s215
        $region28: #{tpu_custom_call.1} parent=23 // pred_fallthru
          _
        // Predicated region
        $region29: #{tpu_custom_call.1} parent=23 // pred_check
          %p232 = pneg %p92
        $region30: #{tpu_custom_call.1} parent=23 // pred_check_branch
          %234 = sbr.rel (%p232) target = $region32
        $region31: #{tpu_custom_call.1} parent=23 // pred_region
          %s235 = sand.u32 %s82, 1
          %s236 = scalar_lea.sflag [#allocation7], %s235
          %s237 = sand.u32 %s82, 1
          %s238 = smul.addr %s237, 8
          %s239 = scalar_lea.vmem [#allocation6], %s238
          %s241 = ssub.s32 128, 128
          %242 = vsyncadd %s236, %s241
          %s243 = sadd.s32 %s29, %s28
          %s244 = smul.addr %s243, 128
          %s245 = scalar_lea.hbm %s1, %s244
          %s247 = sshll.u32 %s239, 4
          %s248 = int_to_ptr.vmem [resolvable:$true] %s247
          %250 = dma.hbm_to_vmem [thread:$0]  %s245, 128, %s248, %s236
        $region32: #{tpu_custom_call.1} parent=23 // pred_fallthru
          _
      $region24: #{tpu_custom_call.1} parent=5 // pred_fallthru
        _
      %p251 = scmp.le.s32.totalorder 1, %s21
      %p252 = scmp.lt.s32.totalorder %s21, 7
      %p253 = pnand %p251, %p252
      %p254 = pneg %p253
      // Predicated region
      $region33: #{tpu_custom_call.1} parent=5 // pred_check
        _
      $region34: #{tpu_custom_call.1} parent=5 // pred_check_branch
        %256 = sbr.rel (%p253) target = $region36
      $region35: #{tpu_custom_call.1} parent=5 // pred_region
        %s257 = ssub.s32 %s21, 1
        %s258 = sand.u32 %s57, 1
        %s259 = scalar_lea.sflag [#allocation3], %s258
        %s260 = sand.u32 %s57, 1
        %s261 = smul.addr %s260, 2
        %s262 = scalar_lea.vmem [#allocation2], %s261
        // Predicated region
        $region37: #{tpu_custom_call.1} parent=35 // pred_check
          %p263 = pneg %p70
        $region38: #{tpu_custom_call.1} parent=35 // pred_check_branch
          %265 = sbr.rel (%p263) target = $region40
        $region39: #{tpu_custom_call.1} parent=35 // pred_region
          %266 = dma.done %s259, 32
        $region40: #{tpu_custom_call.1} parent=35 // pred_fallthru
          _
        %s267 = sand.u32 %s85, 1
        %s268 = scalar_lea.sflag [#allocation7], %s267
        %s269 = sand.u32 %s85, 1
        %s270 = smul.addr %s269, 8
        %s271 = scalar_lea.vmem [#allocation6], %s270
        // Predicated region
        $region41: #{tpu_custom_call.1} parent=35 // pred_check
          %p272 = pneg %p98
        $region42: #{tpu_custom_call.1} parent=35 // pred_check_branch
          %274 = sbr.rel (%p272) target = $region44
        $region43: #{tpu_custom_call.1} parent=35 // pred_region
          %275 = dma.done %s268, 128
        $region44: #{tpu_custom_call.1} parent=35 // pred_fallthru
          _
        // Predicated region
        $region45: #{tpu_custom_call.1} parent=35 // pred_check
          %p276 = pneg %p119
        $region46: #{tpu_custom_call.1} parent=35 // pred_check_branch
          %278 = sbr.rel (%p276) target = $region48
        $region47: #{tpu_custom_call.1} parent=35 // pred_region
          %279 = dma.done [#allocation5], 16
        $region48: #{tpu_custom_call.1} parent=35 // pred_fallthru
          _
        // Predicated region
        $region49: #{tpu_custom_call.1} parent=35 // pred_check
          %p280 = pneg %p140
        $region50: #{tpu_custom_call.1} parent=35 // pred_check_branch
          %282 = sbr.rel (%p280) target = $region52
        $region51: #{tpu_custom_call.1} parent=35 // pred_region
          %283 = dma.done [#allocation10], 16
        $region52: #{tpu_custom_call.1} parent=35 // pred_fallthru
          _
        %284 = sfence
        %s285 = sand.u32 %s57, 1
        %s286 = scalar_lea.sflag [#allocation3], %s285
        %s287 = sand.u32 %s57, 1
        %s288 = smul.addr %s287, 2
        %s289 = scalar_lea.vmem [#allocation2], %s288
        %p290 = pneg %p70
        %p291 = pneg %p67
        %s292 = sand.u32 %s85, 1
        %s293 = scalar_lea.sflag [#allocation7], %s292
        %s294 = sand.u32 %s85, 1
        %s295 = smul.addr %s294, 8
        %s296 = scalar_lea.vmem [#allocation6], %s295
        %p297 = pneg %p98
        %p298 = pneg %p95
        %p299 = pneg %p119
        %p300 = pneg %p116
        %p301 = pneg %p140
        %p302 = pneg %p137
        %p303 = pneg %p170
        %p304 = pneg %p167
        %s305 = sand.u32 %s157, 1
        %s306 = scalar_lea.sflag [#allocation4], %s305
        %s307 = sand.u32 %s157, 1
        %s308 = smul.addr %s307, 8
        %s309 = scalar_lea.vmem [#allocation11], %s308
        %v310 = vld [vmem:[%s262] sm:$0x3]
        %v311 = vunpack.c.0.s8 %v310
        %v312 = vand.u32 %v311, 255
        %v313 = vcvt.s32.f32 %v312
        %v314 = vld [vmem:[%s271] sm:$0xff]
        %v315 = vadd.f32 %v313, %v314
        %v316 = vmax.f32 %v315, 0.0
        %v317 = vmin.f32 %v316, 255.0
        %s318 = sld [smem:[#allocation8 + %s31]]
        %v319 = vstv %s318
        %v320 = vmul.f32 %v317, %v319
        %s321 = sld [smem:[#allocation9 + %s31]]
        %v322 = vstv %s321
        %v323 = vadd.f32 %v320, %v322
        %324 = vst [vmem:[%s309] sm:$0xff] %v323
        %s325 = sand.u32 %s157, 1
        %s326 = scalar_lea.sflag [#allocation4], %s325
        %s327 = sand.u32 %s157, 1
        %s328 = smul.addr %s327, 8
        %s329 = scalar_lea.vmem [#allocation11], %s328
        // Predicated region
        $region53: #{tpu_custom_call.1} parent=35 // pred_check
          %p330 = pneg %p167
        $region54: #{tpu_custom_call.1} parent=35 // pred_check_branch
          %332 = sbr.rel (%p330) target = $region56
        $region55: #{tpu_custom_call.1} parent=35 // pred_region
          %s334 = ssub.s32 128, 128
          %335 = vsyncadd %s326, %s334
          %s336 = sadd.s32 %s32, %s31
          %s337 = smul.addr %s33, 3
          %s338 = sadd.s32 %s336, %s337
          %s339 = smul.addr %s338, 128
          %s340 = scalar_lea.hbm %s4, %s339
          %s342 = sshll.u32 %s329, 4
          %s343 = int_to_ptr.vmem [resolvable:$true] %s342
          %345 = dma.vmem_to_hbm [thread:$0]  %s343, 128, %s340, %s326
        $region56: #{tpu_custom_call.1} parent=35 // pred_fallthru
          _
      $region36: #{tpu_custom_call.1} parent=5 // pred_fallthru
        _
      %p346 = scmp.le.s32.totalorder 2, %s21
      // Predicated region
      $region57: #{tpu_custom_call.1} parent=5 // pred_check
        %p347 = pneg %p346
      $region58: #{tpu_custom_call.1} parent=5 // pred_check_branch
        %349 = sbr.rel (%p347) target = $region60
      $region59: #{tpu_custom_call.1} parent=5 // pred_region
        %s350 = ssub.s32 %s21, 2
        // Predicated region
        $region61: #{tpu_custom_call.1} parent=59 // pred_check
          %p351 = pneg %p173
        $region62: #{tpu_custom_call.1} parent=59 // pred_check_branch
          %353 = sbr.rel (%p351) target = $region64
        $region63: #{tpu_custom_call.1} parent=59 // pred_region
          %s354 = sand.u32 %s158, 1
          %s355 = scalar_lea.sflag [#allocation4], %s354
          %s356 = sand.u32 %s158, 1
          %s357 = smul.addr %s356, 8
          %s358 = scalar_lea.vmem [#allocation11], %s357
          %359 = dma.done %s355, 128
        $region64: #{tpu_custom_call.1} parent=59 // pred_fallthru
          _
      $region60: #{tpu_custom_call.1} parent=5 // pred_fallthru
        _
    $region6: #{tpu_custom_call.1} parent=1 // loop_footer
      %s25 = sadd.s32 1, %s21
    $region7: #{tpu_custom_call.1} parent=1 // loop_footer_branch
      %20 = sbr.rel target = $region3
    $region8: #{tpu_custom_call.1} parent=1 // loop_exit
      _
    %360 = vsyncpa [#allocation3], 1
    %s361 = scalar_lea.sflag [#allocation3], 1
    %362 = vsyncpa %s361, 1
    %363 = vsyncpa [#allocation7], 1
    %s364 = scalar_lea.sflag [#allocation7], 1
    %365 = vsyncpa %s364, 1
    %366 = vsyncpa [#allocation4], 1
    %s367 = scalar_lea.sflag [#allocation4], 1
    %368 = vsyncpa %s367, 1
    %369 = vsyncpa [#allocation5], 1
    %s370 = scalar_lea.sflag [#allocation5], 1
    %371 = vsyncpa %s370, 1
    %372 = vsyncpa [#allocation10], 1

</llo_original>
